<compile_context>
chip_gen: v7x
topology: tpu7x:2x2x1
jax: 0.10.0
libtpu: 0.0.40
codegen_flags: <defaults>
</compile_context>

<pallas_src>
import functools

import jax
import jax.numpy as jnp
from jax import lax
from jax.experimental import pallas as pl
from jax.experimental.pallas import tpu as pltpu

LANES = 128
SUBLANES = 8
_ALIGN = LANES * SUBLANES  # 1024 elems: keeps kernel rows a multiple of 8


def _round_up(x, m):
    return (x + m - 1) // m * m


def _focal_factor(one_minus_pt, gamma):
    """(1 - p_t) ** gamma, with integer gamma as repeated multiplies (no exp/log)."""
    if float(gamma).is_integer() and gamma >= 0:
        g = int(gamma)
        if g == 0:
            return jnp.ones_like(one_minus_pt)
        f = one_minus_pt
        for _ in range(g - 1):
            f = f * one_minus_pt
        return f
    return one_minus_pt ** gamma


def _focal_loss_kernel(logits_ref, targets_ref, out_ref, *,
                       gamma, alpha, last_valid_rows, masked, approx_recip):
    x = logits_ref[...].astype(jnp.float32)
    t = targets_ref[...].astype(jnp.float32)

    # One shared exp feeds both the sigmoid and the stable BCE term (e <= 1).
    e = jnp.exp(-jnp.abs(x))
    one_plus_e = 1.0 + e
    if approx_recip:
        inv = pl.reciprocal(one_plus_e, approx=True)   # single EUP vrcp
    else:
        inv = 1.0 / one_plus_e
    p = jnp.where(x >= 0.0, inv, e * inv)              # sigmoid(x)

    # Numerically stable BCE-with-logits; log(1+e) reuses one_plus_e (e <= 1).
    bce = jnp.maximum(x, 0.0) - x * t + jnp.log(one_plus_e)

    # 1 - p_t = p + t - 2*p*t ; alpha_factor with constants folded at trace time.
    one_minus_pt = p + t - 2.0 * (p * t)
    alpha_factor = (1.0 - alpha) + (2.0 * alpha - 1.0) * t
    focal = alpha_factor * _focal_factor(one_minus_pt, gamma) * bce

    tile = focal.shape[0]

    def _partial(v):
        # (tile,128) -> (tile//8, 8, 128) -> sum leading axis: plain VPU adds and
        # an unmasked (8,128)-aligned store.
        return v.reshape(tile // SUBLANES, SUBLANES, LANES).sum(axis=0, keepdims=True)

    if masked:
        last = pl.num_programs(0) - 1

        @pl.when(pl.program_id(0) != last)
        def _():
            out_ref[...] = _partial(focal)

        @pl.when(pl.program_id(0) == last)
        def _():
            # Only the last (ragged) block pays for the mask. The select keeps
            # garbage/NaN from the padded DMA rows out of the sum.
            row_ids = lax.broadcasted_iota(jnp.int32, focal.shape, 0)
            out_ref[...] = _partial(jnp.where(row_ids < last_valid_rows, focal, 0.0))
    else:
        out_ref[...] = _partial(focal)


def _focal_elementwise(x, t, gamma, alpha):
    """Plain-JAX per-element focal loss (used only for the <=1023-element tail)."""
    x = x.astype(jnp.float32)
    t = t.astype(jnp.float32)
    p = jax.nn.sigmoid(x)
    bce = jnp.maximum(x, 0.0) - x * t + jnp.log1p(jnp.exp(-jnp.abs(x)))
    one_minus_pt = p + t - 2.0 * (p * t)
    alpha_factor = (1.0 - alpha) + (2.0 * alpha - 1.0) * t
    return alpha_factor * (one_minus_pt ** gamma) * bce


def focal_loss(logits, targets, *, gamma=2.0, alpha=0.25, reduction="mean",
               tile_rows=4096, approx_reciprocal=True):
    """Pallas TPU sigmoid focal loss with 'mean'/'sum' reduction."""
    assert logits.shape == targets.shape
    n = int(logits.size)
    gamma = float(gamma)
    alpha = float(alpha)

    # Flatten in NATIVE dtype (bitcast for contiguous inputs; cast happens in-kernel).
    flat_l = jnp.ravel(logits)
    flat_t = jnp.ravel(targets)

    # 1024-element-aligned prefix -> kernel; ragged tail -> plain JAX (no jnp.pad copy).
    main = (n // _ALIGN) * _ALIGN
    rem = n - main

    tail_sum = jnp.float32(0.0)
    if rem:
        tail_sum = jnp.sum(_focal_elementwise(flat_l[main:], flat_t[main:], gamma, alpha))

    if main == 0:
        total = tail_sum  # tiny input: nothing worth launching a kernel for
    else:
        rows = main // LANES          # always a multiple of 8
        l2d = flat_l[:main].reshape(rows, LANES)
        t2d = flat_t[:main].reshape(rows, LANES)

        # Tile selection: big blocks to amortize per-step overhead, but >= 2 blocks
        # for mid-size inputs so the "parallel" axis can split across v7x's 2 TCs.
        tile_rows = max(SUBLANES, (int(tile_rows) // SUBLANES) * SUBLANES)
        _MIN_SPLIT_TILE = 512
        if rows <= 2 * _MIN_SPLIT_TILE:
            tile = rows                                            # single block
        else:
            tile = min(tile_rows, _round_up(pl.cdiv(rows, 2), SUBLANES))
        num_blocks = pl.cdiv(rows, tile)
        last_valid_rows = rows - (num_blocks - 1) * tile
        masked = last_valid_rows != tile

        kernel = functools.partial(
            _focal_loss_kernel, gamma=gamma, alpha=alpha,
            last_valid_rows=last_valid_rows, masked=masked,
            approx_recip=bool(approx_reciprocal))

        # 2 inputs x 2 pipeline buffers x tile block (native dtype) + headroom.
        vmem_needed = 2 * tile * LANES * (l2d.dtype.itemsize + t2d.dtype.itemsize)
        vmem_limit = max(vmem_needed + (4 << 20), 32 << 20)

        partials = pl.pallas_call(
            kernel,
            out_shape=jax.ShapeDtypeStruct((num_blocks, SUBLANES, LANES), jnp.float32),
            grid_spec=pltpu.PrefetchScalarGridSpec(
                num_scalar_prefetch=0,
                grid=(num_blocks,),
                in_specs=[
                    pl.BlockSpec((tile, LANES), lambda i: (i, 0)),
                    pl.BlockSpec((tile, LANES), lambda i: (i, 0)),
                ],
                out_specs=pl.BlockSpec((1, SUBLANES, LANES), lambda i: (i, 0, 0)),
            ),
            compiler_params=pltpu.CompilerParams(
                dimension_semantics=("parallel",),
                vmem_limit_bytes=int(vmem_limit),
            ),
        )(l2d, t2d)

        total = jnp.sum(partials) + tail_sum

    if reduction == "mean":
        return total / jnp.float32(n)
    return total


def _focal_loss_ref(logits, targets, gamma=2.0, alpha=0.25, reduction="mean"):
    x = logits.astype(jnp.float32)
    t = targets.astype(jnp.float32)
    p = jax.nn.sigmoid(x)
    bce = jnp.maximum(x, 0.0) - x * t + jnp.log1p(jnp.exp(-jnp.abs(x)))
    p_t = p * t + (1 - p) * (1 - t)
    fl = (alpha * t + (1 - alpha) * (1 - t)) * (1 - p_t) ** gamma * bce
    return jnp.mean(fl) if reduction == "mean" else jnp.sum(fl)


if __name__ == "__main__":
    key = jax.random.PRNGKey(0)
    k1, k2, k3, k4 = jax.random.split(key, 4)

    # --- Test 1: NCHW-style small shape (lane-aligned), bf16 targets (exact 0/1).
    shape = (2, 4, 16, 16)
    logits = jax.random.normal(k1, shape, dtype=jnp.float32) * 2.0
    targets = (jax.random.uniform(k2, shape) > 0.5).astype(jnp.bfloat16)
    ref = _focal_loss_ref(logits, targets.astype(jnp.float32))

    loss = jax.block_until_ready(focal_loss(logits, targets))            # approx rcp
    assert jnp.allclose(loss, ref, rtol=5e-3, atol=1e-5), (loss, ref)

    loss_exact = jax.block_until_ready(
        focal_loss(logits, targets, approx_reciprocal=False))            # exact rcp
    assert jnp.allclose(loss_exact, ref, rtol=1e-5, atol=1e-6), (loss_exact, ref)

    # --- Test 2: non-aligned flat size -> exercises ragged-last-block masking and
    #     the plain-JAX tail path, with 'sum' reduction.
    n2 = 1160 * 128 + 165
    logits2 = jax.random.normal(k3, (n2,), dtype=jnp.float32) * 2.0
    targets2 = (jax.random.uniform(k4, (n2,)) > 0.5).astype(jnp.float32)
    ref2 = _focal_loss_ref(logits2, targets2, reduction="sum")
    loss2 = jax.block_until_ready(focal_loss(logits2, targets2, reduction="sum"))
    assert jnp.allclose(loss2, ref2, rtol=5e-3, atol=1e-3), (loss2, ref2)

    print("KERNEL_OK")
</pallas_src>

<mosaic_0001>
module attributes {stable_mosaic.version = 11 : i64} {
  func.func @_focal_loss_kernel(%arg0: i32, %arg1: memref<16x128xf32, #tpu.memory_space<vmem>>, %arg2: memref<16x128xbf16, #tpu.memory_space<vmem>>, %arg3: memref<1x8x128xf32, #tpu.memory_space<vmem>>) attributes {dimension_semantics = [#tpu.dimension_semantics<parallel>], iteration_bounds = array<i64: 1>, scalar_prefetch = 0 : i64, scratch_operands = 0 : i64, tpu.core_type = #tpu.core_type<tc>, window_params = [{transform_indices = @transform_0, window_bounds = array<i64: 16, 128>}, {transform_indices = @transform_1, window_bounds = array<i64: 16, 128>}, {transform_indices = @transform_2, window_bounds = array<i64: 1, 8, 128>}]} {
    %c0 = arith.constant 0 : index
    %c0_0 = arith.constant 0 : index
    %0 = vector.load %arg1[%c0, %c0_0] : memref<16x128xf32, #tpu.memory_space<vmem>>, vector<16x128xf32>
    %c0_1 = arith.constant 0 : index
    %c0_2 = arith.constant 0 : index
    %1 = vector.load %arg2[%c0_1, %c0_2] : memref<16x128xbf16, #tpu.memory_space<vmem>>, vector<16x128xbf16>
    %2 = arith.extf %1 : vector<16x128xbf16> to vector<16x128xf32>
    %3 = math.absf %0 : vector<16x128xf32>
    %cst = arith.constant 0.000000e+00 : f32
    %4 = vector.broadcast %cst : f32 to vector<16x128xf32>
    %5 = arith.subf %4, %3 : vector<16x128xf32>
    %6 = math.exp %5 : vector<16x128xf32>
    %cst_3 = arith.constant 1.000000e+00 : f32
    %7 = vector.broadcast %cst_3 : f32 to vector<16x128xf32>
    %8 = arith.addf %7, %6 : vector<16x128xf32>
    %9 = tpu.reciprocal %8 {approx = true} : vector<16x128xf32> -> vector<16x128xf32>
    %cst_4 = arith.constant 0.000000e+00 : f32
    %10 = vector.broadcast %cst_4 : f32 to vector<16x128xf32>
    %11 = arith.cmpf oge, %0, %10 : vector<16x128xf32>
    %12 = arith.mulf %6, %9 : vector<16x128xf32>
    %13 = arith.select %11, %9, %12 : vector<16x128xi1>, vector<16x128xf32>
    %cst_5 = arith.constant 0.000000e+00 : f32
    %14 = vector.broadcast %cst_5 : f32 to vector<16x128xf32>
    %15 = arith.maximumf %0, %14 : vector<16x128xf32>
    %16 = arith.mulf %0, %2 : vector<16x128xf32>
    %17 = arith.subf %15, %16 : vector<16x128xf32>
    %18 = math.log %8 : vector<16x128xf32>
    %19 = arith.addf %17, %18 : vector<16x128xf32>
    %20 = arith.addf %13, %2 : vector<16x128xf32>
    %21 = arith.mulf %13, %2 : vector<16x128xf32>
    %cst_6 = arith.constant 2.000000e+00 : f32
    %22 = vector.broadcast %cst_6 : f32 to vector<16x128xf32>
    %23 = arith.mulf %22, %21 : vector<16x128xf32>
    %24 = arith.subf %20, %23 : vector<16x128xf32>
    %cst_7 = arith.constant -5.000000e-01 : f32
    %25 = vector.broadcast %cst_7 : f32 to vector<16x128xf32>
    %26 = arith.mulf %25, %2 : vector<16x128xf32>
    %cst_8 = arith.constant 7.500000e-01 : f32
    %27 = vector.broadcast %cst_8 : f32 to vector<16x128xf32>
    %28 = arith.addf %27, %26 : vector<16x128xf32>
    %29 = arith.mulf %24, %24 : vector<16x128xf32>
    %30 = arith.mulf %28, %29 : vector<16x128xf32>
    %31 = arith.mulf %30, %19 : vector<16x128xf32>
    %32 = vector.shape_cast %31 : vector<16x128xf32> to vector<2x8x128xf32>
    %cst_9 = arith.constant dense<0.000000e+00> : vector<8x128xf32>
    %33 = vector.multi_reduction <add>, %32, %cst_9 [0] : vector<2x8x128xf32> to vector<8x128xf32>
    %34 = vector.shape_cast %33 : vector<8x128xf32> to vector<1x8x128xf32>
    %c0_10 = arith.constant 0 : index
    %c0_11 = arith.constant 0 : index
    %c0_12 = arith.constant 0 : index
    %35 = vector.load %arg3[%c0_10, %c0_11, %c0_12] : memref<1x8x128xf32, #tpu.memory_space<vmem>>, vector<1x8x128xf32>
    tpu.vector_store %arg3[%c0_10, %c0_11, %c0_12], %34 {strides = array<i32>} : memref<1x8x128xf32, #tpu.memory_space<vmem>>, vector<1x8x128xf32>,
    return
  }
  func.func @transform_0(%arg0: i32) -> (i32, i32) {
    %c0_i32 = arith.constant 0 : i32
    %c0_i32_0 = arith.constant 0 : i32
    return %arg0, %c0_i32 : i32, i32
  }
  func.func @transform_1(%arg0: i32) -> (i32, i32) {
    %c0_i32 = arith.constant 0 : i32
    %c0_i32_0 = arith.constant 0 : i32
    return %arg0, %c0_i32 : i32, i32
  }
  func.func @transform_2(%arg0: i32) -> (i32, i32, i32) {
    %c0_i32 = arith.constant 0 : i32
    %c0_i32_0 = arith.constant 0 : i32
    %c0_i32_1 = arith.constant 0 : i32
    return %arg0, %c0_i32, %c0_i32_0 : i32, i32, i32
  }
}

</mosaic_0001>

<llo_original>
// kernel: tpu_custom_call.1
$region0: #{tpu_custom_call.1}
  #allocation0 [shape = 'u32[]', space=smem, size = 0x4, offset = 0x4, fixed_abs, tag = 'smem constant byte address 0x4 - core index']
  #allocation1 [shape = 'u32[144,128]{1,0:T(1,128)}', space=vmem, size = 0x12000, scoped, tag = 'internal scratch']
  %s0 = inlined_call_operand.hbm [shape: f32[16,128], index: 0, kind: input, shape index: {}]
  %s1 = inlined_call_operand.hbm [shape: bf16[16,128], index: 1, kind: input, shape index: {}]
  %s2 = inlined_call_operand.hbm [shape: f32[1,8,128], index: 2, kind: output, shape index: {}]
  %s3 = sld [smem:[#allocation0]]
  $region26: #{tpu_custom_call.1} parent=0
    _
  %s5 = ssub.s32 1, %s3
  %s6 = scalar_select 0, %s5, %s3
  $region1: #{tpu_custom_call.1} parent=0
    #allocation2 [shape = 'u8[8192]{0}', space=vmem, size = 0x2000, scoped, tag = 'input window, operand 0, single buffered']
    #allocation3 [shape = 's32[1]{0}', space=sflag, size = 0x4, scoped, tag = 'scoped memory for tpu_custom_call.1']
    #allocation4 [shape = 's32[1]{0}', space=sflag, size = 0x4, scoped, tag = 'scoped memory for tpu_custom_call.1']
    #allocation5 [shape = 'u8[4096]{0}', space=vmem, size = 0x1000, scoped, tag = 'input window, operand 1, single buffered']
    #allocation6 [shape = 's32[1]{0}', space=sflag, size = 0x4, scoped, tag = 'scoped memory for tpu_custom_call.1']
    #allocation7 [shape = 'u8[4096]{0}', space=vmem, size = 0x1000, scoped, tag = 'output window, operand 0, single buffered']
    %7 = vsyncpa [#allocation3], 0
    %8 = vsyncpa [#allocation6], 0
    %9 = vsyncpa [#allocation4], 0
    // Predicated region
    $region2: #{tpu_custom_call.1} parent=1 // pred_check
      _
    $region3: #{tpu_custom_call.1} parent=1 // pred_check_branch
      %11 = sbr.rel (0) target = $region5
    $region4: #{tpu_custom_call.1} parent=1 // pred_region
      %s13 = ssub.s32 256, 256
      %14 = vsyncadd [#allocation3], %s13
      %s15 = sshll.u32 [#allocation2], 4
      %s16 = int_to_ptr.vmem [resolvable:$true] %s15
      %21 = dma.hbm_to_vmem [thread:$0]  %s0, 256, %s16, [#allocation3], 128, 128, 8
    $region5: #{tpu_custom_call.1} parent=1 // pred_fallthru
      _
    // Predicated region
    $region6: #{tpu_custom_call.1} parent=1 // pred_check
      _
    $region7: #{tpu_custom_call.1} parent=1 // pred_check_branch
      %23 = sbr.rel (0) target = $region9
    $region8: #{tpu_custom_call.1} parent=1 // pred_region
      %s25 = ssub.s32 128, 128
      %26 = vsyncadd [#allocation6], %s25
      %s27 = sshll.u32 [#allocation5], 4
      %s28 = int_to_ptr.vmem [resolvable:$true] %s27
      %33 = dma.hbm_to_vmem [thread:$0]  %s1, 128, %s28, [#allocation6], 64, 64, 4
    $region9: #{tpu_custom_call.1} parent=1 // pred_fallthru
      _
    // Predicated region
    $region10: #{tpu_custom_call.1} parent=1 // pred_check
      _
    $region11: #{tpu_custom_call.1} parent=1 // pred_check_branch
      %35 = sbr.rel (0) target = $region13
    $region12: #{tpu_custom_call.1} parent=1 // pred_region
      %36 = dma.done [#allocation3], 256
    $region13: #{tpu_custom_call.1} parent=1 // pred_fallthru
      _
    // Predicated region
    $region14: #{tpu_custom_call.1} parent=1 // pred_check
      _
    $region15: #{tpu_custom_call.1} parent=1 // pred_check_branch
      %38 = sbr.rel (0) target = $region17
    $region16: #{tpu_custom_call.1} parent=1 // pred_region
      %39 = dma.done [#allocation6], 128
    $region17: #{tpu_custom_call.1} parent=1 // pred_fallthru
      _
    %v40 = vld [vmem:[#allocation2] sm:$0xff]
    %v41 = vld [vmem:[#allocation2 + $0x8] sm:$0xff]
    %v42 = vld [vmem:[#allocation5] sm:$0xf]
    %v43 = vld [vmem:[#allocation5 + $0x4] sm:$0xf]
    %v44 = vunpack.c.l.bf16 %v42
    %v45 = vunpack.c.l.bf16 %v43
    %v46 = vand.u32 2147483647, %v40
    %v47 = vand.u32 2147483647, %v41
    %v48 = vsub.f32 0.0, %v46
    %v49 = vsub.f32 0.0, %v47
    %v50 = vmul.f32 %v48, 1.442695
    %v51 = vpow.pop %v50
    %v52 = vmul.f32 %v49, 1.442695
    %v53 = vpow.pop %v52
    %v54 = vadd.f32 %v51, 1.0
    %v55 = vadd.f32 %v53, 1.0
    %v56 = vrcp.pop %v54
    %v57 = vrcp.pop %v55
    %vm58 = vcmp.ge.f32.partialorder %v40, 0.0
    %vm59 = vcmp.ge.f32.partialorder %v41, 0.0
    %v60 = vmul.f32 %v51, %v56
    %v61 = vmul.f32 %v53, %v57
    %v62 = vsel %vm58, %v56, %v60
    %v63 = vsel %vm59, %v57, %v61
    %v64 = vmax.f32 %v40, 0.0
    %v65 = vmax.f32 %v41, 0.0
    %v66 = vmul.f32 %v40, %v44
    %v67 = vmul.f32 %v41, %v45
    %v68 = vsub.f32 %v64, %v66
    %v69 = vsub.f32 %v65, %v67
    %v70 = vlog2.pop %v54
    %v71 = vmul.f32 %v70, 0.6931472
    %v72 = vlog2.pop %v55
    %v73 = vmul.f32 %v72, 0.6931472
    %v74 = vadd.f32 %v68, %v71
    %v75 = vadd.f32 %v69, %v73
    %v76 = vadd.f32 %v62, %v44
    %v77 = vadd.f32 %v63, %v45
    %v78 = vmul.f32 %v62, %v44
    %v79 = vmul.f32 %v63, %v45
    %v80 = vmul.f32 %v78, 2.0
    %v81 = vmul.f32 %v79, 2.0
    %v82 = vsub.f32 %v76, %v80
    %v83 = vsub.f32 %v77, %v81
    %v84 = vmul.f32 %v44, -0.5
    %v85 = vmul.f32 %v45, -0.5
    %v86 = vadd.f32 %v84, 0.75
    %v87 = vadd.f32 %v85, 0.75
    %v88 = vmul.f32 %v82, %v82
    %v89 = vmul.f32 %v83, %v83
    %v90 = vmul.f32 %v86, %v88
    %v91 = vmul.f32 %v87, %v89
    %v92 = vmul.f32 %v90, %v74
    %v93 = vmul.f32 %v91, %v75
    %v94 = vadd.f32 %v92, %v93
    %95 = vst [vmem:[#allocation7] sm:$0xff] %v94
    // Predicated region
    $region18: #{tpu_custom_call.1} parent=1 // pred_check
      _
    $region19: #{tpu_custom_call.1} parent=1 // pred_check_branch
      %97 = sbr.rel (0) target = $region21
    $region20: #{tpu_custom_call.1} parent=1 // pred_region
      %s99 = ssub.s32 128, 128
      %100 = vsyncadd [#allocation4], %s99
      %s102 = sshll.u32 [#allocation7], 4
      %s103 = int_to_ptr.vmem [resolvable:$true] %s102
      %105 = dma.vmem_to_hbm [thread:$0]  %s103, 128, %s2, [#allocation4]
    $region21: #{tpu_custom_call.1} parent=1 // pred_fallthru
      _
    // Predicated region
    $region22: #{tpu_custom_call.1} parent=1 // pred_check
      _
    $region23: #{tpu_custom_call.1} parent=1 // pred_check_branch
      %107 = sbr.rel (0) target = $region25
    $region24: #{tpu_custom_call.1} parent=1 // pred_region
      %108 = dma.done [#allocation4], 128
    $region25: #{tpu_custom_call.1} parent=1 // pred_fallthru
      _
    %109 = vsyncpa [#allocation3], 1
    %110 = vsyncpa [#allocation6], 1
    %111 = vsyncpa [#allocation4], 1

</llo_original>
